<compile_context>
chip_gen: v5e
topology: v5e:2x2
jax: 0.10.0
libtpu: 0.0.40
codegen_flags: <defaults>
</compile_context>

<pallas_src>
import functools

import jax
import jax.numpy as jnp
from jax.experimental import pallas as pl
from jax.experimental.pallas import tpu as pltpu


# ---------------------------------------------------------------------------
# Generation-aware scoped-VMEM limit (v7x: 64 MiB physical -> 48 MiB cap;
# v5e/v6e: 128 MiB physical -> 96 MiB cap).
# ---------------------------------------------------------------------------
@functools.lru_cache(maxsize=None)
def _vmem_limit_bytes():
    phys = 64 * 1024 * 1024  # conservative fallback = v7x physical VMEM
    try:
        info = pltpu.get_tpu_info()
        phys = int(getattr(info, "vmem_capacity_bytes", phys))
    except Exception:
        pass
    return int(phys * 3 // 4)


def _pick_tile(dim, target, multiple):
    """Largest tile <= target that divides dim and is a multiple of `multiple`
    (falls back to the full dim, which is always a legal block extent)."""
    if dim <= target:
        return dim
    t = (target // multiple) * multiple
    while t >= multiple:
        if dim % t == 0:
            return t
        t -= multiple
    return dim


# ---------------------------------------------------------------------------
# Generic tiled matmul:  y = x @ w_t   (weights pre-transposed once at load)
# ---------------------------------------------------------------------------
def _matmul_kernel(x_ref, w_ref, o_ref, acc_ref):
    @pl.when(pl.program_id(2) == 0)
    def _():
        acc_ref[...] = jnp.zeros(acc_ref.shape, acc_ref.dtype)

    acc_ref[...] += jnp.dot(x_ref[...], w_ref[...],
                            preferred_element_type=jnp.float32)

    @pl.when(pl.program_id(2) == pl.num_programs(2) - 1)
    def _():
        o_ref[...] = acc_ref[...].astype(o_ref.dtype)


def _linear(x, w_t, *, tm=512, tn=512, tk=512):
    """x: [M, K] @ w_t: [K, N] -> [M, N]."""
    M, K = x.shape
    K2, N = w_t.shape
    assert K == K2
    tm = _pick_tile(M, tm, 8)
    tn = _pick_tile(N, tn, 128)
    tk = _pick_tile(K, tk, 128)
    itemsize = x.dtype.itemsize
    return pl.pallas_call(
        _matmul_kernel,
        out_shape=jax.ShapeDtypeStruct((M, N), x.dtype),
        grid=(M // tm, N // tn, K // tk),
        in_specs=[
            pl.BlockSpec((tm, tk), lambda i, j, k: (i, k)),
            pl.BlockSpec((tk, tn), lambda i, j, k: (k, j)),
        ],
        out_specs=pl.BlockSpec((tm, tn), lambda i, j, k: (i, j)),
        scratch_shapes=[pltpu.VMEM((tm, tn), jnp.float32)],
        compiler_params=pltpu.CompilerParams(
            dimension_semantics=("parallel", "parallel", "arbitrary"),
            vmem_limit_bytes=_vmem_limit_bytes()),
        cost_estimate=pl.CostEstimate(
            flops=2 * M * N * K, transcendentals=0,
            bytes_accessed=(M * K + K * N + M * N) * itemsize),
    )(x, w_t)


# ---------------------------------------------------------------------------
# Projection writing directly into head-major [B, n_heads, S, head_dim]
# (no wrapper transposes, no qkv slice copies).
# ---------------------------------------------------------------------------
def _proj_heads_kernel(x_ref, w_ref, o_ref, acc_ref, *, head_dim, nh):
    @pl.when(pl.program_id(3) == 0)
    def _():
        acc_ref[...] = jnp.zeros(acc_ref.shape, acc_ref.dtype)

    acc_ref[...] += jnp.dot(x_ref[0], w_ref[...],
                            preferred_element_type=jnp.float32)

    @pl.when(pl.program_id(3) == pl.num_programs(3) - 1)
    def _():
        acc = acc_ref[...]
        # Static unroll: per-head lane slices (128-aligned at production
        # head_dim), written straight into the head-major output block.
        for g in range(nh):
            o_ref[0, g] = acc[:, g * head_dim:(g + 1) * head_dim].astype(o_ref.dtype)


def _project_to_heads(x, w_t, *, n_heads, head_dim):
    """x: [B, S, K]; w_t: [K, n_heads*head_dim] -> [B, n_heads, S, head_dim]."""
    B, S, K = x.shape
    K2, N = w_t.shape
    assert K == K2 and N == n_heads * head_dim

    tm = _pick_tile(S, 512, 8)
    tk = _pick_tile(K, 512, 128)
    if head_dim % 128 == 0:
        nh = max(1, min(n_heads, 512 // head_dim))   # lane-dense ~512-wide blocks
        while n_heads % nh:
            nh -= 1
    else:
        nh = n_heads   # small / unaligned head_dim: full-lane-extent blocks (toy)
    tn = nh * head_dim

    kernel = functools.partial(_proj_heads_kernel, head_dim=head_dim, nh=nh)
    itemsize = x.dtype.itemsize
    return pl.pallas_call(
        kernel,
        out_shape=jax.ShapeDtypeStruct((B, n_heads, S, head_dim), x.dtype),
        grid=(B, S // tm, n_heads // nh, K // tk),
        in_specs=[
            pl.BlockSpec((1, tm, tk), lambda b, si, j, k: (b, si, k)),
            pl.BlockSpec((tk, tn), lambda b, si, j, k: (k, j)),
        ],
        out_specs=pl.BlockSpec((1, nh, tm, head_dim),
                               lambda b, si, j, k: (b, j, si, 0)),
        scratch_shapes=[pltpu.VMEM((tm, tn), jnp.float32)],
        compiler_params=pltpu.CompilerParams(
            dimension_semantics=("parallel", "parallel", "parallel", "arbitrary"),
            vmem_limit_bytes=_vmem_limit_bytes()),
        cost_estimate=pl.CostEstimate(
            flops=2 * B * S * K * N, transcendentals=0,
            bytes_accessed=(B * S * K + K * N + B * S * N) * itemsize),
    )(x, w_t)


# ---------------------------------------------------------------------------
# RoPE kernel: cos/sin/rotation matrix stay resident across the batch*head axis
# ---------------------------------------------------------------------------
def _rope_kernel(x_ref, cos_ref, sin_ref, rot_ref, o_ref):
    x = x_ref[0].astype(jnp.float32)                       # [ts, D]
    # rotate_half via a tiny [D, D] signed-permutation matmul: exact (entries
    # 0/+-1), lowers for any head_dim, MXU cost hides under the tile DMA.
    rot = jnp.dot(x, rot_ref[...], preferred_element_type=jnp.float32)
    o_ref[0] = (x * cos_ref[...] + rot * sin_ref[...]).astype(o_ref.dtype)


def _apply_rope(x, cos, sin, rot_mat, *, ts):
    """x: [BH, S, D]; cos/sin: [S, D] fp32; rot_mat: [D, D] fp32."""
    BH, S, D = x.shape
    itemsize = x.dtype.itemsize
    return pl.pallas_call(
        _rope_kernel,
        out_shape=jax.ShapeDtypeStruct((BH, S, D), x.dtype),
        # seq axis outermost, batch*heads innermost: the cos/sin/rot blocks
        # depend only on `si`, so they stay VMEM-resident across all BH steps.
        grid=(S // ts, BH),
        in_specs=[
            pl.BlockSpec((1, ts, D), lambda si, i: (i, si, 0)),
            pl.BlockSpec((ts, D), lambda si, i: (si, 0)),
            pl.BlockSpec((ts, D), lambda si, i: (si, 0)),
            pl.BlockSpec((D, D), lambda si, i: (0, 0)),
        ],
        out_specs=pl.BlockSpec((1, ts, D), lambda si, i: (i, si, 0)),
        compiler_params=pltpu.CompilerParams(
            dimension_semantics=("parallel", "parallel"),
            vmem_limit_bytes=_vmem_limit_bytes()),
        cost_estimate=pl.CostEstimate(
            flops=2 * BH * S * D * D + 4 * BH * S * D, transcendentals=0,
            bytes_accessed=2 * BH * S * D * itemsize + (2 * S * D + D * D) * 4),
    )(x, cos, sin, rot_mat)


# ---------------------------------------------------------------------------
# Flash attention with tanh soft-cap; one GQA group per invocation;
# output written directly in [B, S, Hq*D] when lane-aligned.
# ---------------------------------------------------------------------------
def _flash_kernel(q_ref, k_ref, v_ref, o_ref, m_ref, l_ref, acc_ref,
                  *, scale, cap, flat_out):
    ki = pl.program_id(3)

    @pl.when(ki == 0)
    def _():
        m_ref[...] = jnp.full(m_ref.shape, -jnp.inf, dtype=m_ref.dtype)
        l_ref[...] = jnp.zeros(l_ref.shape, l_ref.dtype)
        acc_ref[...] = jnp.zeros(acc_ref.shape, acc_ref.dtype)

    G, tq, D = q_ref.shape[2], q_ref.shape[3], q_ref.shape[4]
    q = q_ref[0, 0].reshape(G * tq, D)   # all query heads of this KV group
    k = k_ref[0, 0]                      # [tk, D]
    v = v_ref[0, 0]

    # scores = q @ k^T (contract minor dims, fp32 MXU accumulation)
    s = jax.lax.dot_general(q, k, (((1,), (1,)), ((), ())),
                            preferred_element_type=jnp.float32)   # [G*tq, tk]
    s = cap * jnp.tanh(s * scale)
    # TODO(synk): reference mask branch is a no-op `pass`; add causal masking
    # here (before the running-max update) for real decoder use.
    # TODO(synk): on v6e/v7x the tanh/exp soft-cap can run in bf16 (EUP has
    # bf16) to relieve the saturating EUP slot; keep fp32 on v5e.

    m_prev = m_ref[...]                                           # [G*tq, 1]
    m_new = jnp.maximum(m_prev, jnp.max(s, axis=-1, keepdims=True))
    alpha = jnp.exp(m_prev - m_new)
    p = jnp.exp(s - m_new)                                        # [G*tq, tk]
    l_ref[...] = alpha * l_ref[...] + jnp.sum(p, axis=-1, keepdims=True)
    acc_ref[...] = alpha * acc_ref[...] + jnp.dot(
        p.astype(v.dtype), v, preferred_element_type=jnp.float32) # [G*tq, D]
    m_ref[...] = m_new

    @pl.when(ki == pl.num_programs(3) - 1)
    def _():
        inv_l = pl.reciprocal(l_ref[...], approx=False)   # one recip per row
        out = acc_ref[...] * inv_l                        # [G*tq, D] fp32
        if flat_out:
            # Store straight into [B, S, Hq*D]: per-head 128-aligned lane
            # slices, lane-dense (G*D wide) unmasked stores, no relayout.
            for g in range(G):
                o_ref[0, :, g * D:(g + 1) * D] = (
                    out[g * tq:(g + 1) * tq, :].astype(o_ref.dtype))
        else:
            # Unaligned (small-shape) fallback: head-major 5-D output.
            o_ref[0, 0] = out.reshape(G, tq, D).astype(o_ref.dtype)


def _flash_attention(q, k, v, *, attn_output_multiplier, max_attn_val,
                     tq, tk, flat_out):
    """q: [B, Hkv, G, S, D], k/v: [B, Hkv, S, D]."""
    B, Hkv, G, S, D = q.shape
    Hq = Hkv * G
    itemsize = q.dtype.itemsize
    kernel = functools.partial(_flash_kernel, scale=attn_output_multiplier,
                               cap=max_attn_val, flat_out=flat_out)
    if flat_out:
        out_shape = jax.ShapeDtypeStruct((B, S, Hq * D), q.dtype)
        out_spec = pl.BlockSpec((1, tq, G * D), lambda b, h, qi, ki: (b, qi, h))
    else:
        out_shape = jax.ShapeDtypeStruct((B, Hkv, G, S, D), q.dtype)
        out_spec = pl.BlockSpec((1, 1, G, tq, D),
                                lambda b, h, qi, ki: (b, h, 0, qi, 0))
    return pl.pallas_call(
        kernel,
        out_shape=out_shape,
        grid=(B, Hkv, S // tq, S // tk),
        in_specs=[
            pl.BlockSpec((1, 1, G, tq, D), lambda b, h, qi, ki: (b, h, 0, qi, 0)),
            # TODO(synk): add pipeline_mode=pl.Buffered(3) on k/v if xprof shows
            # exposed KV DMA (re-check VMEM headroom on v7x first).
            pl.BlockSpec((1, 1, tk, D), lambda b, h, qi, ki: (b, h, ki, 0)),
            pl.BlockSpec((1, 1, tk, D), lambda b, h, qi, ki: (b, h, ki, 0)),
        ],
        out_specs=out_spec,
        scratch_shapes=[
            pltpu.VMEM((G * tq, 1), jnp.float32),   # running max
            pltpu.VMEM((G * tq, 1), jnp.float32),   # running denominator
            pltpu.VMEM((G * tq, D), jnp.float32),   # running accumulator
        ],
        compiler_params=pltpu.CompilerParams(
            dimension_semantics=("parallel", "parallel", "parallel", "arbitrary"),
            vmem_limit_bytes=_vmem_limit_bytes()),
        cost_estimate=pl.CostEstimate(
            flops=4 * B * Hq * S * S * D,
            transcendentals=2 * B * Hq * S * S,
            bytes_accessed=(2 * B * Hq * S * D
                            + 2 * B * Hkv * S * D * (S // tq)) * itemsize),
    )(q, k, v)


# ---------------------------------------------------------------------------
# Rotary embedding tables (plain JAX glue; fp32 end-to-end)
# ---------------------------------------------------------------------------
def _rotary_cos_sin(seq_len, dim, base=10000.0):
    inv_freq = 1.0 / (base ** (jnp.arange(0, dim, 2, dtype=jnp.float32) / dim))
    t = jnp.arange(seq_len, dtype=jnp.float32)
    freqs = jnp.outer(t, inv_freq)                   # [S, D/2]
    emb = jnp.concatenate([freqs, freqs], axis=-1)   # [S, D]
    return jnp.cos(emb), jnp.sin(emb)


def _rotate_half_matrix(d):
    """R such that x @ R == rotate_half(x) == cat([-x2, x1])."""
    assert d % 2 == 0
    half = d // 2
    eye = jnp.eye(half, dtype=jnp.float32)
    z = jnp.zeros((half, half), jnp.float32)
    top = jnp.concatenate([z, eye], axis=1)    # x[:half]  -> +out[half:]
    bot = jnp.concatenate([-eye, z], axis=1)   # x[half:]  -> -out[:half]
    return jnp.concatenate([top, bot], axis=0)


# ---------------------------------------------------------------------------
# Parameter preparation (one-time, amortized over all forward calls)
# ---------------------------------------------------------------------------
def prepare_params(torch_layout_params):
    """Transpose PyTorch [out, in] weights to [in, out] once at load time so
    every projection is a plain MXU-native [M,K]@[K,N] dot (no per-tile
    transpose, no per-call weight concatenation)."""
    return {
        "wq_t": jnp.asarray(torch_layout_params["wq"]).T,
        "wk_t": jnp.asarray(torch_layout_params["wk"]).T,
        "wv_t": jnp.asarray(torch_layout_params["wv"]).T,
        "wo_t": jnp.asarray(torch_layout_params["wo"]).T,
    }


# ---------------------------------------------------------------------------
# Full MultiHeadAttention forward
# ---------------------------------------------------------------------------
def multi_head_attention(hidden_states, prepared_params, *, num_heads,
                         num_key_value_heads, attn_output_multiplier=1.0,
                         max_attn_val=30.0):
    B, S, H = hidden_states.shape
    D = H // num_heads
    Hq, Hkv = num_heads, num_key_value_heads
    G = Hq // Hkv

    # q/k/v projections write directly into head-major [B, Hn, S, D]: no
    # wrapper transposes, no qkv slicing copies, no per-call weight concat.
    # TODO(synk): a fused single-pass QKV projection would read hidden_states
    # once instead of three times; kept separate so each output lands in its
    # final layout with zero extra HBM round trips.
    q4 = _project_to_heads(hidden_states, prepared_params["wq_t"],
                           n_heads=Hq, head_dim=D)          # [B, Hq, S, D]
    k4 = _project_to_heads(hidden_states, prepared_params["wk_t"],
                           n_heads=Hkv, head_dim=D)         # [B, Hkv, S, D]
    v4 = _project_to_heads(hidden_states, prepared_params["wv_t"],
                           n_heads=Hkv, head_dim=D)         # [B, Hkv, S, D]

    cos, sin = _rotary_cos_sin(S, D)       # fp32
    rot_mat = _rotate_half_matrix(D)       # fp32 [D, D]
    ts = _pick_tile(S, 512, 8)
    # TODO(synk): fusing the q-side RoPE into the flash prologue (q block is
    # resident across the KV axis) would save one more HBM round trip of q.
    q4 = _apply_rope(q4.reshape(B * Hq, S, D), cos, sin, rot_mat, ts=ts)
    k4 = _apply_rope(k4.reshape(B * Hkv, S, D), cos, sin, rot_mat, ts=ts)

    # GQA: query head h uses KV head h // G (repeat_interleave), so the G query
    # heads of one KV head are contiguous -> free reshape, no repeat_kv copy.
    q5 = q4.reshape(B, Hkv, G, S, D)
    k5 = k4.reshape(B, Hkv, S, D)

    tq = _pick_tile(S, max(8, min(512, 2048 // max(G, 1))), 8)   # cap G*tq ~2048
    tkv = _pick_tile(S, 512, 8)
    flat_out = (G * D) % 128 == 0     # lane-dense direct [B, S, Hq*D] output
    attn = _flash_attention(q5, k5, v4,
                            attn_output_multiplier=attn_output_multiplier,
                            max_attn_val=max_attn_val,
                            tq=tq, tk=tkv, flat_out=flat_out)
    if flat_out:
        attn2d = attn.reshape(B * S, Hq * D)                      # free
    else:
        # Small/unaligned-shape fallback only (e.g. the toy test shapes).
        attn2d = attn.transpose(0, 3, 1, 2, 4).reshape(B * S, Hq * D)

    out = _linear(attn2d, prepared_params["wo_t"])                # [B*S, H]
    return out.reshape(B, S, H)


# ---------------------------------------------------------------------------
# Pure JAX reference (sanity check, consumes PyTorch-layout weights)
# ---------------------------------------------------------------------------
def _reference(hidden_states, params, *, num_heads, num_key_value_heads,
               attn_output_multiplier=1.0, max_attn_val=30.0):
    B, S, H = hidden_states.shape
    D = H // num_heads
    groups = num_heads // num_key_value_heads

    q = hidden_states @ params["wq"].T
    k = hidden_states @ params["wk"].T
    v = hidden_states @ params["wv"].T
    q = q.reshape(B, S, num_heads, D).transpose(0, 2, 1, 3)
    k = k.reshape(B, S, num_key_value_heads, D).transpose(0, 2, 1, 3)
    v = v.reshape(B, S, num_key_value_heads, D).transpose(0, 2, 1, 3)

    cos, sin = _rotary_cos_sin(S, D)
    cos = cos[None, None]
    sin = sin[None, None]

    def rotate_half(x):
        x1, x2 = x[..., :D // 2], x[..., D // 2:]
        return jnp.concatenate([-x2, x1], axis=-1)

    q = q * cos + rotate_half(q) * sin
    k = k * cos + rotate_half(k) * sin

    k = jnp.repeat(k, groups, axis=1)
    v = jnp.repeat(v, groups, axis=1)

    s = jnp.einsum("bhqd,bhkd->bhqk", q, k).astype(jnp.float32)
    s = max_attn_val * jnp.tanh(s * attn_output_multiplier)
    p = jax.nn.softmax(s, axis=-1)
    o = jnp.einsum("bhqk,bhkd->bhqd", p, v)
    o = o.transpose(0, 2, 1, 3).reshape(B, S, H)
    return o @ params["wo"].T


# ---------------------------------------------------------------------------
if __name__ == "__main__":
    B, S = 2, 8
    hidden_size = 32
    num_heads = 4
    num_key_value_heads = 2
    head_dim = hidden_size // num_heads

    key = jax.random.PRNGKey(0)
    kx, kq, kk, kv, ko = jax.random.split(key, 5)

    x = jax.random.normal(kx, (B, S, hidden_size), dtype=jnp.float32)

    scale = 1.0 / (hidden_size ** 0.5)
    torch_params = {
        "wq": jax.random.normal(kq, (num_heads * head_dim, hidden_size), jnp.float32) * scale,
        "wk": jax.random.normal(kk, (num_key_value_heads * head_dim, hidden_size), jnp.float32) * scale,
        "wv": jax.random.normal(kv, (num_key_value_heads * head_dim, hidden_size), jnp.float32) * scale,
        "wo": jax.random.normal(ko, (hidden_size, num_heads * head_dim), jnp.float32) * scale,
    }
    params = prepare_params(torch_params)   # one-time prep (transpose to [in, out])

    out = multi_head_attention(
        x, params,
        num_heads=num_heads,
        num_key_value_heads=num_key_value_heads,
        attn_output_multiplier=1.0,
        max_attn_val=30.0,
    )
    out = jax.block_until_ready(out)

    ref = _reference(
        x, torch_params,
        num_heads=num_heads,
        num_key_value_heads=num_key_value_heads,
        attn_output_multiplier=1.0,
        max_attn_val=30.0,
    )
    assert out.shape == (B, S, hidden_size)
    err = float(jnp.max(jnp.abs(out - ref)))
    assert err < 1e-3, f"mismatch vs JAX reference: {err}"

    print("KERNEL_OK")
</pallas_src>

<mosaic_0001>
module attributes {stable_mosaic.version = 11 : i64} {
  func.func @_proj_heads_kernel(%arg0: i32, %arg1: i32, %arg2: i32, %arg3: i32, %arg4: memref<1x8x32xf32, #tpu.memory_space<vmem>>, %arg5: memref<32x32xf32, #tpu.memory_space<vmem>>, %arg6: memref<1x4x8x8xf32, #tpu.memory_space<vmem>>, %arg7: memref<8x32xf32, #tpu.memory_space<vmem>>) attributes {dimension_semantics = [#tpu.dimension_semantics<parallel>, #tpu.dimension_semantics<parallel>, #tpu.dimension_semantics<parallel>, #tpu.dimension_semantics<arbitrary>], iteration_bounds = array<i64: 2, 1, 1, 1>, scalar_prefetch = 0 : i64, scratch_operands = 1 : i64, tpu.core_type = #tpu.core_type<tc>, window_params = [{transform_indices = @transform_0, window_bounds = array<i64: 1, 8, 32>}, {transform_indices = @transform_1, window_bounds = array<i64: 32, 32>}, {transform_indices = @transform_2, window_bounds = array<i64: 1, 4, 8, 8>}]} {
    %c0_i32 = arith.constant 0 : i32
    %0 = arith.cmpi eq, %arg3, %c0_i32 : i32
    %1 = arith.extui %0 : i1 to i32
    %c0_i32_0 = arith.constant 0 : i32
    %2 = arith.cmpi ne, %1, %c0_i32_0 : i32
    scf.if %2 {
      %cst_11 = arith.constant 0.000000e+00 : f32
      %13 = vector.broadcast %cst_11 : f32 to vector<8x32xf32>
      %c0_12 = arith.constant 0 : index
      %c0_13 = arith.constant 0 : index
      %14 = vector.load %arg7[%c0_12, %c0_13] : memref<8x32xf32, #tpu.memory_space<vmem>>, vector<8x32xf32>
      tpu.vector_store %arg7[%c0_12, %c0_13], %13 {strides = array<i32>} : memref<8x32xf32, #tpu.memory_space<vmem>>, vector<8x32xf32>,
    } else {
    }
    %c0 = arith.constant 0 : index
    %c0_1 = arith.constant 0 : index
    %3 = vector.load %arg7[%c0, %c0_1] : memref<8x32xf32, #tpu.memory_space<vmem>>, vector<8x32xf32>
    %c0_2 = arith.constant 0 : index
    %c0_3 = arith.constant 0 : index
    %c0_4 = arith.constant 0 : index
    %4 = vector.load %arg4[%c0_2, %c0_3, %c0_4] : memref<1x8x32xf32, #tpu.memory_space<vmem>>, vector<1x8x32xf32>
    %5 = vector.shape_cast %4 : vector<1x8x32xf32> to vector<8x32xf32>
    %c0_5 = arith.constant 0 : index
    %c0_6 = arith.constant 0 : index
    %6 = vector.load %arg5[%c0_5, %c0_6] : memref<32x32xf32, #tpu.memory_space<vmem>>, vector<32x32xf32>
    %cst = arith.constant dense<0.000000e+00> : vector<8x32xf32>
    %7 = tpu.matmul %5, %6, %cst {dimension_numbers = #tpu.dot_dimension_numbers<[1], [0], [0], [1], [0, 0, 1, 1], [], []>} : vector<8x32xf32>, vector<32x32xf32>, vector<8x32xf32> -> vector<8x32xf32>
    %8 = arith.addf %3, %7 : vector<8x32xf32>
    %c0_7 = arith.constant 0 : index
    %c0_8 = arith.constant 0 : index
    %9 = vector.load %arg7[%c0_7, %c0_8] : memref<8x32xf32, #tpu.memory_space<vmem>>, vector<8x32xf32>
    tpu.vector_store %arg7[%c0_7, %c0_8], %8 {strides = array<i32>} : memref<8x32xf32, #tpu.memory_space<vmem>>, vector<8x32xf32>,
    %c0_i32_9 = arith.constant 0 : i32
    %10 = arith.cmpi eq, %arg3, %c0_i32_9 : i32
    %11 = arith.extui %10 : i1 to i32
    %c0_i32_10 = arith.constant 0 : i32
    %12 = arith.cmpi ne, %11, %c0_i32_10 : i32
    scf.if %12 {
      %c0_11 = arith.constant 0 : index
      %c0_12 = arith.constant 0 : index
      %13 = vector.load %arg7[%c0_11, %c0_12] : memref<8x32xf32, #tpu.memory_space<vmem>>, vector<8x32xf32>
      %14 = vector.extract_strided_slice %13 {offsets = [0, 0], sizes = [8, 8], strides = [1, 1]} : vector<8x32xf32> to vector<8x8xf32>
      %c0_13 = arith.constant 0 : index
      %c0_14 = arith.constant 0 : index
      %c0_15 = arith.constant 0 : index
      %c0_16 = arith.constant 0 : index
      %15 = vector.load %arg6[%c0_13, %c0_14, %c0_15, %c0_16] : memref<1x4x8x8xf32, #tpu.memory_space<vmem>>, vector<1x1x8x8xf32>
      %16 = vector.shape_cast %15 : vector<1x1x8x8xf32> to vector<8x8xf32>
      %17 = vector.shape_cast %14 : vector<8x8xf32> to vector<1x1x8x8xf32>
      tpu.vector_store %arg6[%c0_13, %c0_14, %c0_15, %c0_16], %17 {strides = array<i32>} : memref<1x4x8x8xf32, #tpu.memory_space<vmem>>, vector<1x1x8x8xf32>,
      %18 = vector.extract_strided_slice %13 {offsets = [0, 8], sizes = [8, 8], strides = [1, 1]} : vector<8x32xf32> to vector<8x8xf32>
      %c0_17 = arith.constant 0 : index
      %c1 = arith.constant 1 : index
      %c0_18 = arith.constant 0 : index
      %c0_19 = arith.constant 0 : index
      %19 = vector.load %arg6[%c0_17, %c1, %c0_18, %c0_19] : memref<1x4x8x8xf32, #tpu.memory_space<vmem>>, vector<1x1x8x8xf32>
      %20 = vector.shape_cast %19 : vector<1x1x8x8xf32> to vector<8x8xf32>
      %21 = vector.shape_cast %18 : vector<8x8xf32> to vector<1x1x8x8xf32>
      tpu.vector_store %arg6[%c0_17, %c1, %c0_18, %c0_19], %21 {strides = array<i32>} : memref<1x4x8x8xf32, #tpu.memory_space<vmem>>, vector<1x1x8x8xf32>,
      %22 = vector.extract_strided_slice %13 {offsets = [0, 16], sizes = [8, 8], strides = [1, 1]} : vector<8x32xf32> to vector<8x8xf32>
      %c0_20 = arith.constant 0 : index
      %c2 = arith.constant 2 : index
      %c0_21 = arith.constant 0 : index
      %c0_22 = arith.constant 0 : index
      %23 = vector.load %arg6[%c0_20, %c2, %c0_21, %c0_22] : memref<1x4x8x8xf32, #tpu.memory_space<vmem>>, vector<1x1x8x8xf32>
      %24 = vector.shape_cast %23 : vector<1x1x8x8xf32> to vector<8x8xf32>
      %25 = vector.shape_cast %22 : vector<8x8xf32> to vector<1x1x8x8xf32>
      tpu.vector_store %arg6[%c0_20, %c2, %c0_21, %c0_22], %25 {strides = array<i32>} : memref<1x4x8x8xf32, #tpu.memory_space<vmem>>, vector<1x1x8x8xf32>,
      %26 = vector.extract_strided_slice %13 {offsets = [0, 24], sizes = [8, 8], strides = [1, 1]} : vector<8x32xf32> to vector<8x8xf32>
      %c0_23 = arith.constant 0 : index
      %c3 = arith.constant 3 : index
      %c0_24 = arith.constant 0 : index
      %c0_25 = arith.constant 0 : index
      %27 = vector.load %arg6[%c0_23, %c3, %c0_24, %c0_25] : memref<1x4x8x8xf32, #tpu.memory_space<vmem>>, vector<1x1x8x8xf32>
      %28 = vector.shape_cast %27 : vector<1x1x8x8xf32> to vector<8x8xf32>
      %29 = vector.shape_cast %26 : vector<8x8xf32> to vector<1x1x8x8xf32>
      tpu.vector_store %arg6[%c0_23, %c3, %c0_24, %c0_25], %29 {strides = array<i32>} : memref<1x4x8x8xf32, #tpu.memory_space<vmem>>, vector<1x1x8x8xf32>,
    } else {
    }
    return
  }
  func.func @transform_0(%arg0: i32, %arg1: i32, %arg2: i32, %arg3: i32) -> (i32, i32, i32) {
    %c0_i32 = arith.constant 0 : i32
    return %arg0, %arg1, %arg3 : i32, i32, i32
  }
  func.func @transform_1(%arg0: i32, %arg1: i32, %arg2: i32, %arg3: i32) -> (i32, i32) {
    %c0_i32 = arith.constant 0 : i32
    return %arg3, %arg2 : i32, i32
  }
  func.func @transform_2(%arg0: i32, %arg1: i32, %arg2: i32, %arg3: i32) -> (i32, i32, i32, i32) {
    %c0_i32 = arith.constant 0 : i32
    %c0_i32_0 = arith.constant 0 : i32
    return %arg0, %arg2, %arg1, %c0_i32 : i32, i32, i32, i32
  }
}

</mosaic_0001>

<llo_original>
// kernel: tpu_custom_call.1
$region0: #{tpu_custom_call.1}
  #allocation0 [shape = 'u32[]', space=smem, size = 0x4, offset = 0x4, fixed_abs, tag = 'smem constant byte address 0x4 - core index']
  #allocation1 [shape = 'u32[72,128]{1,0:T(1,128)}', space=vmem, size = 0x9000, scoped, tag = 'internal scratch']
  #allocation2 [shape = 'f32[8,32]{1,0:T(8,128)}', space=vmem, size = 0x1000, scoped, tag = 'scratch operand']
  %s0 = inlined_call_operand.hbm [shape: f32[2,8,32], index: 0, kind: input, shape index: {}]
  %s1 = inlined_call_operand.hbm [shape: f32[32,32], index: 1, kind: input, shape index: {}]
  %s2 = inlined_call_operand.hbm [shape: f32[2,4,8,8], index: 2, kind: output, shape index: {}]
  %s3 = sld [smem:[#allocation0]]
  $region57: #{tpu_custom_call.1} parent=0
    _
  %s5 = ssub.s32 1, %s3
  %s6 = scalar_select 0, %s5, %s3
  $region1: #{tpu_custom_call.1} parent=0
    #allocation3 [shape = 'u8[8192]{0}', space=vmem, size = 0x2000, scoped, tag = 'input window, operand 0']
    #allocation4 [shape = 's32[2]{0}', space=sflag, size = 0x8, scoped, tag = 'scoped memory for tpu_custom_call.1']
    #allocation5 [shape = 's32[2]{0}', space=sflag, size = 0x8, scoped, tag = 'scoped memory for tpu_custom_call.1']
    #allocation6 [shape = 'u8[16384]{0}', space=vmem, size = 0x4000, scoped, tag = 'input window, operand 1, single buffered']
    #allocation7 [shape = 's32[1]{0}', space=sflag, size = 0x4, scoped, tag = 'scoped memory for tpu_custom_call.1']
    #allocation8 [shape = 'u8[32768]{0}', space=vmem, size = 0x8000, scoped, tag = 'output window, operand 0']
    %7 = vsyncpa [#allocation4], 0
    %s8 = scalar_lea.sflag [#allocation4], 1
    %9 = vsyncpa %s8, 0
    %10 = vsyncpa [#allocation7], 0
    %11 = vsyncpa [#allocation5], 0
    %s12 = scalar_lea.sflag [#allocation5], 1
    %13 = vsyncpa %s12, 0
    loop: start=0, step=1, limit=4
    $region2: #{tpu_custom_call.1} parent=1 // loop_pre_header
      _
    $region3: #{tpu_custom_call.1} parent=1 // loop_header
      %s15 = sphi 0, %s19
      %p16 = scmp.ge.s32.totalorder %s15, 4
      %s22 = sphi 0, %s48
      %s23 = sphi 0, %s44
      %s24 = sphi 0, %s40
      %s25 = sphi 0, %s36
      %s26 = sphi 0, %s22
      %s27 = sphi 0, %s23
      %s28 = sphi 0, %s24
      %s29 = sphi 0, %s25
      %s30 = sphi 0, %s26
      %s31 = sphi 0, %s27
      %s32 = sphi 0, %s28
      %s33 = sphi 0, %s29
      %s55 = sphi 0, %s57
      %s58 = sphi 0, %s55
      %s59 = sphi 0, %s58
      %s75 = sphi 0, %s59
      %s83 = sphi 0, %s85
      %s86 = sphi 0, %s83
      %s87 = sphi 0, %s86
      %s103 = sphi 0, %s87
      %s113 = sphi 0, %s115
      %s116 = sphi 0, %s113
      %s117 = sphi 0, %s116
      %s133 = sphi 0, %s117
    $region4: #{tpu_custom_call.1} parent=1 // loop_header_branch
      %18 = sbr.rel (%p16) target = $region8
    $region5: #{tpu_custom_call.1} parent=1 // loop_body
      %s20 = ssub.s32 %s15, 1
      %s21 = ssub.s32 %s15, 2
      %s34 = sadd.s32 1, %s25
      %p35 = scmp.ge.s32.totalorder %s34, 1
      %s36 = scalar_select %p35, 0, %s34
      %s37 = sadd.s32 1, %s24
      %s38 = scalar_select %p35, %s37, %s24
      %p39 = scmp.ge.s32.totalorder %s38, 1
      %s40 = scalar_select %p39, 0, %s38
      %s41 = sadd.s32 1, %s23
      %s42 = scalar_select %p39, %s41, %s23
      %p43 = scmp.ge.s32.totalorder %s42, 1
      %s44 = scalar_select %p43, 0, %s42
      %s45 = sadd.s32 1, %s22
      %s46 = scalar_select %p43, %s45, %s22
      %p47 = scmp.ge.s32.totalorder %s46, 2
      %s48 = scalar_select %p47, 0, %s46
      %s49 = ssub.s32 %s22, %s48
      %s50 = ssub.s32 %s23, %s44
      %s51 = sor.u32 %s49, %s50
      %s52 = ssub.s32 %s25, %s36
      %s53 = sor.u32 %s51, %s52
      %p54 = scmp.eq.s32.totalorder %s53, 0
      %s56 = sadd.s32 %s55, 1
      %s57 = scalar_select %p54, %s55, %s56
      %p60 = pneg %p54
      %p61 = scmp.eq.s32.totalorder %s15, 1
      %p62 = por %p60, %p61
      %p63 = scmp.ne.s32.totalorder %s55, %s58
      %p64 = scmp.eq.s32.totalorder %s15, 0
      %p65 = por %p63, %p64
      %p66 = scmp.ne.s32.totalorder %s55, %s58
      %p67 = scmp.eq.s32.totalorder %s20, 1
      %p68 = por %p66, %p67
      %p69 = scmp.ne.s32.totalorder %s58, %s59
      %p70 = scmp.eq.s32.totalorder %s20, 0
      %p71 = por %p69, %p70
      %p72 = scmp.ne.s32.totalorder %s58, %s59
      %p73 = scmp.eq.s32.totalorder %s21, 1
      %p74 = por %p72, %p73
      %p76 = scmp.ne.s32.totalorder %s59, %s75
      %p77 = scmp.eq.s32.totalorder %s21, 0
      %p78 = por %p76, %p77
      %s79 = ssub.s32 %s25, %s36
      %s80 = ssub.s32 %s24, %s40
      %s81 = sor.u32 %s79, %s80
      %p82 = scmp.eq.s32.totalorder %s81, 0
      %s84 = sadd.s32 %s83, 1
      %s85 = scalar_select %p82, %s83, %s84
      %p88 = pneg %p82
      %p89 = scmp.eq.s32.totalorder %s15, 1
      %p90 = por %p88, %p89
      %p91 = scmp.ne.s32.totalorder %s83, %s86
      %p92 = scmp.eq.s32.totalorder %s15, 0
      %p93 = por %p91, %p92
      %p94 = scmp.ne.s32.totalorder %s83, %s86
      %p95 = scmp.eq.s32.totalorder %s20, 1
      %p96 = por %p94, %p95
      %p97 = scmp.ne.s32.totalorder %s86, %s87
      %p98 = scmp.eq.s32.totalorder %s20, 0
      %p99 = por %p97, %p98
      %p100 = scmp.ne.s32.totalorder %s86, %s87
      %p101 = scmp.eq.s32.totalorder %s21, 1
      %p102 = por %p100, %p101
      %p104 = scmp.ne.s32.totalorder %s87, %s103
      %p105 = scmp.eq.s32.totalorder %s21, 0
      %p106 = por %p104, %p105
      %s107 = ssub.s32 %s22, %s48
      %s108 = ssub.s32 %s24, %s40
      %s109 = sor.u32 %s107, %s108
      %s110 = ssub.s32 %s23, %s44
      %s111 = sor.u32 %s109, %s110
      %p112 = scmp.eq.s32.totalorder %s111, 0
      %s114 = sadd.s32 %s113, 1
      %s115 = scalar_select %p112, %s113, %s114
      %p118 = pneg %p112
      %p119 = scmp.eq.s32.totalorder %s15, 1
      %p120 = por %p118, %p119
      %p121 = scmp.ne.s32.totalorder %s113, %s116
      %p122 = scmp.eq.s32.totalorder %s15, 0
      %p123 = por %p121, %p122
      %p124 = scmp.ne.s32.totalorder %s113, %s116
      %p125 = scmp.eq.s32.totalorder %s20, 1
      %p126 = por %p124, %p125
      %p127 = scmp.ne.s32.totalorder %s116, %s117
      %p128 = scmp.eq.s32.totalorder %s20, 0
      %p129 = por %p127, %p128
      %p130 = scmp.ne.s32.totalorder %s116, %s117
      %p131 = scmp.eq.s32.totalorder %s21, 1
      %p132 = por %p130, %p131
      %p134 = scmp.ne.s32.totalorder %s117, %s133
      %p135 = scmp.eq.s32.totalorder %s21, 0
      %p136 = por %p134, %p135
      %p137 = scmp.le.s32.totalorder 1, %s15
      %p138 = scmp.lt.s32.totalorder %s15, 3
      %p139 = pnand %p137, %p138
      %p140 = pneg %p139
      // Predicated region
      $region9: #{tpu_custom_call.1} parent=5 // pred_check
        _
      $region10: #{tpu_custom_call.1} parent=5 // pred_check_branch
        %142 = sbr.rel (%p139) target = $region12
      $region11: #{tpu_custom_call.1} parent=5 // pred_region
        %s143 = ssub.s32 %s15, 1
        // Predicated region
        $region13: #{tpu_custom_call.1} parent=11 // pred_check
          %p144 = pneg %p99
        $region14: #{tpu_custom_call.1} parent=11 // pred_check_branch
          %146 = sbr.rel (%p144) target = $region16
        $region15: #{tpu_custom_call.1} parent=11 // pred_region
          %s147 = smul.u32 4, %s29
          %149 = vsyncadd [#allocation7], 0
          %s150 = sadd.s32 %s28, %s147
          %s151 = smul.addr %s150, 8
          %s152 = scalar_lea.hbm %s1, %s151
          %s153 = sshll.u32 %s152, 4
          %s154 = int_to_ptr.hbm [resolvable:$true] %s153
          %s155 = sshll.u32 [#allocation6], 4
          %s156 = int_to_ptr.vmem [resolvable:$true] %s155
          %161 = dma.hbm_to_vmem [thread:$0]  %s154, 512, %s156, [#allocation7], 128, 128, 8
        $region16: #{tpu_custom_call.1} parent=11 // pred_fallthru
          _
      $region12: #{tpu_custom_call.1} parent=5 // pred_fallthru
        _
      %p162 = scmp.lt.s32.totalorder %s15, 2
      // Predicated region
      $region17: #{tpu_custom_call.1} parent=5 // pred_check
        %p163 = pneg %p162
      $region18: #{tpu_custom_call.1} parent=5 // pred_check_branch
        %165 = sbr.rel (%p163) target = $region20
      $region19: #{tpu_custom_call.1} parent=5 // pred_region
        // Predicated region
        $region21: #{tpu_custom_call.1} parent=19 // pred_check
          %p166 = pneg %p65
        $region22: #{tpu_custom_call.1} parent=19 // pred_check_branch
          %168 = sbr.rel (%p166) target = $region24
        $region23: #{tpu_custom_call.1} parent=19 // pred_region
          %s169 = sand.u32 %s55, 1
          %s170 = scalar_lea.sflag [#allocation4], %s169
          %s171 = sand.u32 %s55, 1
          %s172 = smul.addr %s171, 8
          %s173 = scalar_lea.vmem [#allocation3], %s172
          %175 = vsyncadd %s170, 0
          %s176 = sadd.s32 %s25, %s23
          %s177 = sadd.s32 %s176, %s22
          %s178 = smul.addr %s177, 8
          %s179 = scalar_lea.hbm %s0, %s178
          %s181 = sshll.u32 %s179, 4
          %s182 = int_to_ptr.hbm [resolvable:$true] %s181
          %s183 = sshll.u32 %s173, 4
          %s184 = int_to_ptr.vmem [resolvable:$true] %s183
          %186 = dma.hbm_to_vmem [thread:$0]  %s182, 128, %s184, %s170
        $region24: #{tpu_custom_call.1} parent=19 // pred_fallthru
          _
      $region20: #{tpu_custom_call.1} parent=5 // pred_fallthru
        _
      %p187 = scmp.le.s32.totalorder 1, %s15
      %p188 = scmp.lt.s32.totalorder %s15, 3
      %p189 = pnand %p187, %p188
      %p190 = pneg %p189
      // Predicated region
      $region25: #{tpu_custom_call.1} parent=5 // pred_check
        _
      $region26: #{tpu_custom_call.1} parent=5 // pred_check_branch
        %192 = sbr.rel (%p189) target = $region28
      $region27: #{tpu_custom_call.1} parent=5 // pred_region
        %s193 = ssub.s32 %s15, 1
        %s194 = sand.u32 %s58, 1
        %s195 = scalar_lea.sflag [#allocation4], %s194
        %s196 = sand.u32 %s58, 1
        %s197 = smul.addr %s196, 8
        %s198 = scalar_lea.vmem [#allocation3], %s197
        // Predicated region
        $region29: #{tpu_custom_call.1} parent=27 // pred_check
          %p199 = pneg %p71
        $region30: #{tpu_custom_call.1} parent=27 // pred_check_branch
          %201 = sbr.rel (%p199) target = $region32
        $region31: #{tpu_custom_call.1} parent=27 // pred_region
          %203 = dma.done %s195, 128
        $region32: #{tpu_custom_call.1} parent=27 // pred_fallthru
          _
        // Predicated region
        $region33: #{tpu_custom_call.1} parent=27 // pred_check
          %p204 = pneg %p99
        $region34: #{tpu_custom_call.1} parent=27 // pred_check_branch
          %206 = sbr.rel (%p204) target = $region36
        $region35: #{tpu_custom_call.1} parent=27 // pred_region
          %208 = dma.done [#allocation7], 512
        $region36: #{tpu_custom_call.1} parent=27 // pred_fallthru
          _
        %s209 = sand.u32 %s58, 1
        %s210 = scalar_lea.sflag [#allocation4], %s209
        %s211 = sand.u32 %s58, 1
        %s212 = smul.addr %s211, 8
        %s213 = scalar_lea.vmem [#allocation3], %s212
        %p214 = pneg %p71
        %p215 = pneg %p68
        %p216 = pneg %p99
        %p217 = pneg %p96
        %p218 = pneg %p129
        %p219 = pneg %p126
        %s220 = sand.u32 %s116, 1
        %s221 = scalar_lea.sflag [#allocation5], %s220
        %s222 = sand.u32 %s116, 1
        %s223 = smul.addr %s222, 32
        %s224 = scalar_lea.vmem [#allocation8], %s223
        %s225 = smul.u32 4, %s29
        %s226 = smul.u32 4, %s28
        %p227 = scmp.eq.s32.totalorder %s29, 0
        // Predicated region
        $region37: #{tpu_custom_call.1} parent=27 // pred_check
          %p228 = pneg %p227
        $region38: #{tpu_custom_call.1} parent=27 // pred_check_branch
          %230 = sbr.rel (%p228) target = $region40
        $region39: #{tpu_custom_call.1} parent=27 // pred_region
          %vm231 = vcmask 261120
          %232 = vst.msk [vmem:[#allocation2] sm:$0xff] %vm231, 0.0
        $region40: #{tpu_custom_call.1} parent=27 // pred_fallthru
          _
        %v233 = vld [vmem:[#allocation2] sm:$0xff]
        %v234 = vld [vmem:[%s198] sm:$0xff]
        %v235 = vld [vmem:[#allocation6] sm:$0xff]
        %v236 = vld [vmem:[#allocation6 + $0x8] sm:$0xff]
        %v237 = vld [vmem:[#allocation6 + $0x10] sm:$0xff]
        %v238 = vld [vmem:[#allocation6 + $0x18] sm:$0xff]
        %vm239 = vcmask 261120
        %v241 = vsel %vm239, %v234, 0
        %243 = vmatpush.msra.mxu0 0.0
        %244 = vmatpush.msra.mxu0 0.0
        %245 = vmatpush.msra.mxu0 0.0
        %246 = vmatpush.msra.mxu0 0.0
        %247 = vmatpush.msra.mxu0 0.0
        %248 = vmatpush.msra.mxu0 0.0
        %249 = vmatpush.msra.mxu0 0.0
        %250 = vmatpush.msra.mxu0 0.0
        %251 = vmatpush.msra.mxu0 0.0
        %252 = vmatpush.msra.mxu0 0.0
        %253 = vmatpush.msra.mxu0 0.0
        %254 = vmatpush.msra.mxu0 0.0
        %255 = vmatpush.msra.mxu0 %v238
        %256 = vmatpush.msra.mxu0 %v237
        %257 = vmatpush.msra.mxu0 %v236
        %258 = vmatpush.msra.mxu0 %v235
        %259 = vmatmul.f32.gmra.mxu0 %v241
        %v260 = vpop.f32.mrf.mxu0
        %v261 = vadd.f32 0.0, %v260
        %262 = vdwg.mxu0
        %v263 = vadd.f32 %v233, %v261
        %264 = vst.msk [vmem:[#allocation2] sm:$0xff] %vm239, %v263
        // Predicated region
        $region41: #{tpu_custom_call.1} parent=27 // pred_check
          %p265 = pneg %p227
        $region42: #{tpu_custom_call.1} parent=27 // pred_check_branch
          %267 = sbr.rel (%p265) target = $region44
        $region43: #{tpu_custom_call.1} parent=27 // pred_region
          %v268 = vld [vmem:[#allocation2] sm:$0xff]
          %vm269 = vcmask 64512
          %270 = vst.msk [vmem:[%s224] sm:$0xff] %vm269, %v268
          %272 = vrot.lane.b32.xlu0 %v268, 120
          %v273 = vpop.permute.xlu0 %272
          %s275 = scalar_lea.vmem %s224, 8 [#allocation8]
          %276 = vst.msk [vmem:[%s275] sm:$0xff] %vm269, %v273
          %277 = vrot.lane.b32.xlu0 %v268, 112
          %v278 = vpop.permute.xlu0 %277
          %s280 = scalar_lea.vmem %s224, 16 [#allocation8]
          %281 = vst.msk [vmem:[%s280] sm:$0xff] %vm269, %v278
          %282 = vrot.lane.b32.xlu0 %v268, 104
          %v283 = vpop.permute.xlu0 %282
          %s285 = scalar_lea.vmem %s224, 24 [#allocation8]
          %286 = vst.msk [vmem:[%s285] sm:$0xff] %vm269, %v283
        $region44: #{tpu_custom_call.1} parent=27 // pred_fallthru
          _
        %s287 = sand.u32 %s116, 1
        %s288 = scalar_lea.sflag [#allocation5], %s287
        %s289 = sand.u32 %s116, 1
        %s290 = smul.addr %s289, 32
        %s291 = scalar_lea.vmem [#allocation8], %s290
        // Predicated region
        $region45: #{tpu_custom_call.1} parent=27 // pred_check
          %p292 = pneg %p126
        $region46: #{tpu_custom_call.1} parent=27 // pred_check_branch
          %294 = sbr.rel (%p292) target = $region48
        $region47: #{tpu_custom_call.1} parent=27 // pred_region
          %s295 = smul.u32 4, %s28
          %297 = vsyncadd %s288, 0
          %s298 = sadd.s32 %s27, %s295
          %s299 = smul.addr %s26, 4
          %s300 = sadd.s32 %s298, %s299
          %s301 = smul.addr %s300, 8
          %s302 = scalar_lea.hbm %s2, %s301
          %s303 = sshll.u32 %s291, 4
          %s304 = int_to_ptr.vmem [resolvable:$true] %s303
          %s305 = sshll.u32 %s302, 4
          %s306 = int_to_ptr.hbm [resolvable:$true] %s305
          %311 = dma.vmem_to_hbm [thread:$0]  %s304, 512, %s306, %s288, 128, 128, 8
        $region48: #{tpu_custom_call.1} parent=27 // pred_fallthru
          _
      $region28: #{tpu_custom_call.1} parent=5 // pred_fallthru
        _
      %p312 = scmp.le.s32.totalorder 2, %s15
      // Predicated region
      $region49: #{tpu_custom_call.1} parent=5 // pred_check
        %p313 = pneg %p312
      $region50: #{tpu_custom_call.1} parent=5 // pred_check_branch
        %315 = sbr.rel (%p313) target = $region52
      $region51: #{tpu_custom_call.1} parent=5 // pred_region
        %s316 = ssub.s32 %s15, 2
        // Predicated region
        $region53: #{tpu_custom_call.1} parent=51 // pred_check
          %p317 = pneg %p132
        $region54: #{tpu_custom_call.1} parent=51 // pred_check_branch
          %319 = sbr.rel (%p317) target = $region56
        $region55: #{tpu_custom_call.1} parent=51 // pred_region
          %s320 = sand.u32 %s117, 1
          %s321 = scalar_lea.sflag [#allocation5], %s320
          %s322 = sand.u32 %s117, 1
          %s323 = smul.addr %s322, 32
          %s324 = scalar_lea.vmem [#allocation8], %s323
          %326 = dma.done %s321, 512
        $region56: #{tpu_custom_call.1} parent=51 // pred_fallthru
          _
      $region52: #{tpu_custom_call.1} parent=5 // pred_fallthru
        _
    $region6: #{tpu_custom_call.1} parent=1 // loop_footer
      %s19 = sadd.s32 1, %s15
    $region7: #{tpu_custom_call.1} parent=1 // loop_footer_branch
      %14 = sbr.rel target = $region3
    $region8: #{tpu_custom_call.1} parent=1 // loop_exit
      _
    %327 = vsyncpa [#allocation4], 1
    %s328 = scalar_lea.sflag [#allocation4], 1
    %329 = vsyncpa %s328, 1
    %330 = vsyncpa [#allocation7], 1
    %331 = vsyncpa [#allocation5], 1
    %s332 = scalar_lea.sflag [#allocation5], 1
    %333 = vsyncpa %s332, 1

</llo_original>
